<compile_context>
chip_gen: v7x
topology: tpu7x:2x2x1
jax: 0.10.0
libtpu: 0.0.40
codegen_flags: <defaults>
</compile_context>

<pallas_src>
import jax
import jax.numpy as jnp
from jax.experimental import pallas as pl
from jax.experimental.pallas import tpu as pltpu

HID = 64      # hidden width used throughout the model
LANE = 128    # TPU lane width


def covid_kernel(x1_ref, w1_ref, b1_ref, w2_ref, b2_ref, out_ref):
    """Entire CovidModel forward fused into one kernel.

    x1 packs [ss_flat(130) | se(1) | sa(3) | sb(1) | c(n_c)] along K (zero-padded to 256).
    w1 is block-diagonal (256, 384): column groups 0:64/64:128/128:192/192:256/256:320
    hold wss / wse / wsa / wsb(=wse) / (scaling folded into wc); one MXU pass replaces
    five Linears.  w2 packs [ws | wf1 | wf2_pad] as a (64, 256) slab.  b1/b2 match.
    """
    sigmoid = jax.nn.sigmoid

    # Stage 1: all first-layer Linears in one lane-dense matmul.
    z1 = jnp.dot(x1_ref[...], w1_ref[...],
                 preferred_element_type=jnp.float32) + b1_ref[...]
    sg = sigmoid(z1)

    # Embedding product: ss_emb * se_emb * sa_emb * sb_emb (each Sigmoid-activated).
    e = (sg[:, 0 * HID:1 * HID] * sg[:, 1 * HID:2 * HID]
         * sg[:, 2 * HID:3 * HID] * sg[:, 3 * HID:4 * HID])
    # c_emb: SiLU(c_scaled @ wc + bc) = z * sigmoid(z)
    c = z1[:, 4 * HID:5 * HID] * sg[:, 4 * HID:5 * HID]

    # s_emb: SiLU(Linear(64,64))
    s_pre = jnp.dot(e, w2_ref[:, 0:HID],
                    preferred_element_type=jnp.float32) + b2_ref[:, 0:HID]
    s = s_pre * sigmoid(s_pre)

    sc = s * c

    # fc head: Linear(64,64)+SiLU, Linear(64,nA) (nA lane-padded to 128)
    h_pre = jnp.dot(sc, w2_ref[:, HID:2 * HID],
                    preferred_element_type=jnp.float32) + b2_ref[:, HID:2 * HID]
    h = h_pre * sigmoid(h_pre)
    out_ref[...] = (jnp.dot(h, w2_ref[:, 2 * HID:2 * HID + LANE],
                            preferred_element_type=jnp.float32)
                    + b2_ref[:, 2 * HID:2 * HID + LANE])


def init_linear(key, fan_in, fan_out):
    # PyTorch nn.Linear default init: U(-1/sqrt(fan_in), 1/sqrt(fan_in))
    k1, k2 = jax.random.split(key)
    bound = 1.0 / float(fan_in) ** 0.5
    w = jax.random.uniform(k1, (fan_in, fan_out), jnp.float32, -bound, bound)
    b = jax.random.uniform(k2, (1, fan_out), jnp.float32, -bound, bound)
    return w, b


def init_params(key, nA, n_c, d_ss_flat):
    keys = jax.random.split(key, 7)
    params = {}
    params['ss'] = init_linear(keys[0], d_ss_flat, HID)   # ss_emb 'small'
    params['se'] = init_linear(keys[1], 1, HID)           # se_emb 'small'
    params['sa'] = init_linear(keys[2], 3, HID)           # sa_emb 'small'
    # with_budget=False -> sb_emb = copy.deepcopy(se_emb): same initial weights
    params['sb'] = (params['se'][0], params['se'][1])
    params['s'] = init_linear(keys[3], HID, HID)          # s_emb
    params['c'] = init_linear(keys[4], n_c, HID)          # c_emb
    params['fc1'] = init_linear(keys[5], HID, HID)        # fc[0]
    params['fc2'] = init_linear(keys[6], HID, nA)         # fc[2]
    return params


def pack_params(params, sf_sel):
    """Pack all weights/biases into 2 weight slabs + 2 bias slabs (4 DMAs total).

    The scaling factor is folded into wc: (c * sf) @ wc == c @ (sf^T * wc) exactly.
    sb_emb aliases se_emb (with_budget=False) so its weights are just placed twice.
    """
    wss, bss = params['ss']
    wse, bse = params['se']
    wsa, bsa = params['sa']
    wsb, bsb = params['sb']
    ws, bs = params['s']
    wc, bc = params['c']
    wf1, bf1 = params['fc1']
    wf2, bf2 = params['fc2']

    d_ss = wss.shape[0]                        # 130
    n_c = wc.shape[0]
    k_used = d_ss + 1 + 3 + 1 + n_c            # 138
    Kp = ((k_used + LANE - 1) // LANE) * LANE  # 256

    wc_scaled = sf_sel.reshape(n_c, 1).astype(jnp.float32) * wc

    w1 = jnp.zeros((Kp, 6 * HID), jnp.float32)        # (256, 384)
    o = 0
    w1 = w1.at[o:o + d_ss, 0 * HID:1 * HID].set(wss); o += d_ss
    w1 = w1.at[o:o + 1,    1 * HID:2 * HID].set(wse); o += 1
    w1 = w1.at[o:o + 3,    2 * HID:3 * HID].set(wsa); o += 3
    w1 = w1.at[o:o + 1,    3 * HID:4 * HID].set(wsb); o += 1
    w1 = w1.at[o:o + n_c,  4 * HID:5 * HID].set(wc_scaled)

    b1 = jnp.zeros((1, 6 * HID), jnp.float32)
    b1 = b1.at[:, 0 * HID:1 * HID].set(bss)
    b1 = b1.at[:, 1 * HID:2 * HID].set(bse)
    b1 = b1.at[:, 2 * HID:3 * HID].set(bsa)
    b1 = b1.at[:, 3 * HID:4 * HID].set(bsb)
    b1 = b1.at[:, 4 * HID:5 * HID].set(bc)

    nA = wf2.shape[1]
    w2 = jnp.zeros((HID, 2 * HID + LANE), jnp.float32)  # (64, 256)
    w2 = w2.at[:, 0:HID].set(ws)
    w2 = w2.at[:, HID:2 * HID].set(wf1)
    w2 = w2.at[:, 2 * HID:2 * HID + nA].set(wf2)

    b2 = jnp.zeros((1, 2 * HID + LANE), jnp.float32)
    b2 = b2.at[:, 0:HID].set(bs)
    b2 = b2.at[:, HID:2 * HID].set(bf1)
    b2 = b2.at[:, 2 * HID:2 * HID + nA].set(bf2)

    return w1, b1, w2, b2, Kp


def pallas_forward(params, sf_sel, objectives, state, desired_return,
                   desired_horizon, nA, max_batch_tile=256):
    sb, ss, se, sa = state
    B = ss.shape[0]

    ss_flat = ss.reshape(B, -1).astype(jnp.float32)       # Flatten -> (B, 130)
    dr = desired_return[:, list(objectives)].astype(jnp.float32)
    c = jnp.concatenate([dr, desired_horizon.astype(jnp.float32)], axis=-1)

    # Pack all activations into one lane-dense slab matching w1's row layout.
    x = jnp.concatenate([ss_flat,
                         se.astype(jnp.float32),
                         sa.astype(jnp.float32),
                         sb.astype(jnp.float32),
                         c], axis=-1)

    w1, b1, w2, b2, Kp = pack_params(params, sf_sel)

    # Pad batch to a sublane/tile multiple; features zero-pad to Kp (exact result).
    B8 = ((B + 7) // 8) * 8
    tb = min(B8, max_batch_tile)
    Bp = ((B8 + tb - 1) // tb) * tb
    x1 = jnp.pad(x, ((0, Bp - B), (0, Kp - x.shape[1])))

    out = pl.pallas_call(
        covid_kernel,
        out_shape=jax.ShapeDtypeStruct((Bp, LANE), jnp.float32),
        grid=(Bp // tb,),
        in_specs=[
            pl.BlockSpec((tb, Kp), lambda i: (i, 0)),                 # activations pipeline
            pl.BlockSpec((Kp, 6 * HID), lambda i: (0, 0)),            # weights stay resident
            pl.BlockSpec((1, 6 * HID), lambda i: (0, 0)),
            pl.BlockSpec((HID, 2 * HID + LANE), lambda i: (0, 0)),
            pl.BlockSpec((1, 2 * HID + LANE), lambda i: (0, 0)),
        ],
        out_specs=pl.BlockSpec((tb, LANE), lambda i: (i, 0)),
        compiler_params=pltpu.CompilerParams(
            dimension_semantics=("parallel",)),
    )(x1, w1, b1, w2, b2)

    return out[:B, :nA]


def reference_forward(params, sf_sel, objectives, state, desired_return,
                      desired_horizon):
    """Plain-JAX replica of the PyTorch forward, for correctness checking."""
    sb, ss, se, sa = state
    dr = desired_return[:, list(objectives)].astype(jnp.float32)
    c = jnp.concatenate([dr, desired_horizon.astype(jnp.float32)], axis=-1)
    c = c * sf_sel

    def lin(x, wb):
        return x @ wb[0] + wb[1]

    sig = jax.nn.sigmoid
    silu = jax.nn.silu
    s = (sig(lin(ss.reshape(ss.shape[0], -1).astype(jnp.float32), params['ss']))
         * sig(lin(se.astype(jnp.float32), params['se']))
         * sig(lin(sa.astype(jnp.float32), params['sa']))
         * sig(lin(sb.astype(jnp.float32), params['sb'])))
    s = silu(lin(s, params['s']))
    c = silu(lin(c, params['c']))
    sc = s * c
    h = silu(lin(sc, params['fc1']))
    return lin(h, params['fc2'])


if __name__ == "__main__":
    key = jax.random.PRNGKey(0)
    k_in, k_p = jax.random.split(key)

    B, nA = 2, 6
    objectives = (0, 2)
    # scaling_factor passed to __init__: shape (1, num_total_objectives + 1)
    scaling_factor = jnp.array([[1e-2, 2e-2, 3e-2, 1e-3]], dtype=jnp.float32)
    # __init__: scaling_factor[:, objectives + (len(scaling_factor)-1,)]
    # (len(tensor) == shape[0] == 1, replicating the PyTorch indexing quirk)
    sel_idx = list(objectives) + [scaling_factor.shape[0] - 1]
    sf_sel = scaling_factor[:, sel_idx]                     # (1, len(obj)+1)
    n_c = sf_sel.shape[-1]

    params = init_params(k_p, nA, n_c, d_ss_flat=10 * 13)

    ks = jax.random.split(k_in, 6)
    ss = jax.random.normal(ks[0], (B, 10, 13), jnp.float32)
    se = jax.random.normal(ks[1], (B, 1), jnp.float32)
    sa = jax.random.normal(ks[2], (B, 3), jnp.float32)
    sb = jax.random.normal(ks[3], (B, 1), jnp.float32)
    desired_return = jax.random.normal(ks[4], (B, 3), jnp.float32) * 10.0
    desired_horizon = jax.random.uniform(ks[5], (B, 1), jnp.float32, 1.0, 20.0)

    state = (sb, ss, se, sa)

    out = pallas_forward(params, sf_sel, objectives, state, desired_return,
                         desired_horizon, nA)
    out = jax.block_until_ready(out)

    ref = reference_forward(params, sf_sel, objectives, state, desired_return,
                            desired_horizon)
    assert out.shape == (B, nA), out.shape
    assert jnp.allclose(out, ref, rtol=1e-3, atol=1e-3), (out, ref)

    print("KERNEL_OK")
</pallas_src>

<mosaic_0001>
module attributes {stable_mosaic.version = 11 : i64} {
  func.func @covid_kernel(%arg0: i32, %arg1: memref<8x256xf32, #tpu.memory_space<vmem>>, %arg2: memref<256x384xf32, #tpu.memory_space<vmem>>, %arg3: memref<1x384xf32, #tpu.memory_space<vmem>>, %arg4: memref<64x256xf32, #tpu.memory_space<vmem>>, %arg5: memref<1x256xf32, #tpu.memory_space<vmem>>, %arg6: memref<8x128xf32, #tpu.memory_space<vmem>>) attributes {dimension_semantics = [#tpu.dimension_semantics<parallel>], iteration_bounds = array<i64: 1>, scalar_prefetch = 0 : i64, scratch_operands = 0 : i64, tpu.core_type = #tpu.core_type<tc>, window_params = [{transform_indices = @transform_0, window_bounds = array<i64: 8, 256>}, {pipeline_mode = #tpu.pipeline_mode<synchronous>, transform_indices = @transform_1, window_bounds = array<i64: 256, 384>}, {pipeline_mode = #tpu.pipeline_mode<synchronous>, transform_indices = @transform_2, window_bounds = array<i64: 1, 384>}, {pipeline_mode = #tpu.pipeline_mode<synchronous>, transform_indices = @transform_3, window_bounds = array<i64: 64, 256>}, {pipeline_mode = #tpu.pipeline_mode<synchronous>, transform_indices = @transform_4, window_bounds = array<i64: 1, 256>}, {transform_indices = @transform_5, window_bounds = array<i64: 8, 128>}]} {
    %c0 = arith.constant 0 : index
    %c0_0 = arith.constant 0 : index
    %0 = vector.load %arg1[%c0, %c0_0] : memref<8x256xf32, #tpu.memory_space<vmem>>, vector<8x256xf32>
    %c0_1 = arith.constant 0 : index
    %c0_2 = arith.constant 0 : index
    %1 = vector.load %arg2[%c0_1, %c0_2] : memref<256x384xf32, #tpu.memory_space<vmem>>, vector<256x384xf32>
    %cst = arith.constant dense<0.000000e+00> : vector<8x384xf32>
    %2 = tpu.matmul %0, %1, %cst {dimension_numbers = #tpu.dot_dimension_numbers<[1], [0], [0], [1], [0, 0, 1, 1], [], []>} : vector<8x256xf32>, vector<256x384xf32>, vector<8x384xf32> -> vector<8x384xf32>
    %c0_3 = arith.constant 0 : index
    %c0_4 = arith.constant 0 : index
    %3 = vector.load %arg3[%c0_3, %c0_4] : memref<1x384xf32, #tpu.memory_space<vmem>>, vector<1x384xf32>
    %4 = vector.broadcast %3 : vector<1x384xf32> to vector<8x384xf32>
    %5 = arith.addf %2, %4 : vector<8x384xf32>
    %6 = arith.negf %5 : vector<8x384xf32>
    %7 = math.exp %6 : vector<8x384xf32>
    %cst_5 = arith.constant 1.000000e+00 : f32
    %8 = vector.broadcast %cst_5 : f32 to vector<8x384xf32>
    %9 = arith.addf %8, %7 : vector<8x384xf32>
    %10 = arith.divf %8, %9 : vector<8x384xf32>
    %11 = vector.extract_strided_slice %10 {offsets = [0, 0], sizes = [8, 64], strides = [1, 1]} : vector<8x384xf32> to vector<8x64xf32>
    %12 = vector.extract_strided_slice %10 {offsets = [0, 64], sizes = [8, 64], strides = [1, 1]} : vector<8x384xf32> to vector<8x64xf32>
    %13 = arith.mulf %11, %12 : vector<8x64xf32>
    %14 = vector.extract_strided_slice %10 {offsets = [0, 128], sizes = [8, 64], strides = [1, 1]} : vector<8x384xf32> to vector<8x64xf32>
    %15 = arith.mulf %13, %14 : vector<8x64xf32>
    %16 = vector.extract_strided_slice %10 {offsets = [0, 192], sizes = [8, 64], strides = [1, 1]} : vector<8x384xf32> to vector<8x64xf32>
    %17 = arith.mulf %15, %16 : vector<8x64xf32>
    %18 = vector.extract_strided_slice %5 {offsets = [0, 256], sizes = [8, 64], strides = [1, 1]} : vector<8x384xf32> to vector<8x64xf32>
    %19 = vector.extract_strided_slice %10 {offsets = [0, 256], sizes = [8, 64], strides = [1, 1]} : vector<8x384xf32> to vector<8x64xf32>
    %20 = arith.mulf %18, %19 : vector<8x64xf32>
    %c0_6 = arith.constant 0 : index
    %c0_7 = arith.constant 0 : index
    %21 = vector.load %arg4[%c0_6, %c0_7] : memref<64x256xf32, #tpu.memory_space<vmem>>, vector<64x64xf32>
    %cst_8 = arith.constant dense<0.000000e+00> : vector<8x64xf32>
    %22 = tpu.matmul %17, %21, %cst_8 {dimension_numbers = #tpu.dot_dimension_numbers<[1], [0], [0], [1], [0, 0, 1, 1], [], []>} : vector<8x64xf32>, vector<64x64xf32>, vector<8x64xf32> -> vector<8x64xf32>
    %c0_9 = arith.constant 0 : index
    %c0_10 = arith.constant 0 : index
    %23 = vector.load %arg5[%c0_9, %c0_10] : memref<1x256xf32, #tpu.memory_space<vmem>>, vector<1x64xf32>
    %24 = vector.broadcast %23 : vector<1x64xf32> to vector<8x64xf32>
    %25 = arith.addf %22, %24 : vector<8x64xf32>
    %26 = arith.negf %25 : vector<8x64xf32>
    %27 = math.exp %26 : vector<8x64xf32>
    %cst_11 = arith.constant 1.000000e+00 : f32
    %28 = vector.broadcast %cst_11 : f32 to vector<8x64xf32>
    %29 = arith.addf %28, %27 : vector<8x64xf32>
    %30 = arith.divf %28, %29 : vector<8x64xf32>
    %31 = arith.mulf %25, %30 : vector<8x64xf32>
    %32 = arith.mulf %31, %20 : vector<8x64xf32>
    %c0_12 = arith.constant 0 : index
    %c64 = arith.constant 64 : index
    %33 = vector.load %arg4[%c0_12, %c64] : memref<64x256xf32, #tpu.memory_space<vmem>>, vector<64x64xf32>
    %cst_13 = arith.constant dense<0.000000e+00> : vector<8x64xf32>
    %34 = tpu.matmul %32, %33, %cst_13 {dimension_numbers = #tpu.dot_dimension_numbers<[1], [0], [0], [1], [0, 0, 1, 1], [], []>} : vector<8x64xf32>, vector<64x64xf32>, vector<8x64xf32> -> vector<8x64xf32>
    %c0_14 = arith.constant 0 : index
    %c64_15 = arith.constant 64 : index
    %35 = vector.load %arg5[%c0_14, %c64_15] : memref<1x256xf32, #tpu.memory_space<vmem>>, vector<1x64xf32>
    %36 = vector.broadcast %35 : vector<1x64xf32> to vector<8x64xf32>
    %37 = arith.addf %34, %36 : vector<8x64xf32>
    %38 = arith.negf %37 : vector<8x64xf32>
    %39 = math.exp %38 : vector<8x64xf32>
    %cst_16 = arith.constant 1.000000e+00 : f32
    %40 = vector.broadcast %cst_16 : f32 to vector<8x64xf32>
    %41 = arith.addf %40, %39 : vector<8x64xf32>
    %42 = arith.divf %40, %41 : vector<8x64xf32>
    %43 = arith.mulf %37, %42 : vector<8x64xf32>
    %c0_17 = arith.constant 0 : index
    %c128 = arith.constant 128 : index
    %44 = vector.load %arg4[%c0_17, %c128] : memref<64x256xf32, #tpu.memory_space<vmem>>, vector<64x128xf32>
    %cst_18 = arith.constant dense<0.000000e+00> : vector<8x128xf32>
    %45 = tpu.matmul %43, %44, %cst_18 {dimension_numbers = #tpu.dot_dimension_numbers<[1], [0], [0], [1], [0, 0, 1, 1], [], []>} : vector<8x64xf32>, vector<64x128xf32>, vector<8x128xf32> -> vector<8x128xf32>
    %c0_19 = arith.constant 0 : index
    %c128_20 = arith.constant 128 : index
    %46 = vector.load %arg5[%c0_19, %c128_20] : memref<1x256xf32, #tpu.memory_space<vmem>>, vector<1x128xf32>
    %47 = vector.broadcast %46 : vector<1x128xf32> to vector<8x128xf32>
    %48 = arith.addf %45, %47 : vector<8x128xf32>
    %c0_21 = arith.constant 0 : index
    %c0_22 = arith.constant 0 : index
    %49 = vector.load %arg6[%c0_21, %c0_22] : memref<8x128xf32, #tpu.memory_space<vmem>>, vector<8x128xf32>
    tpu.vector_store %arg6[%c0_21, %c0_22], %48 {strides = array<i32>} : memref<8x128xf32, #tpu.memory_space<vmem>>, vector<8x128xf32>,
    return
  }
  func.func @transform_0(%arg0: i32) -> (i32, i32) {
    %c0_i32 = arith.constant 0 : i32
    %c0_i32_0 = arith.constant 0 : i32
    return %arg0, %c0_i32 : i32, i32
  }
  func.func @transform_1(%arg0: i32) -> (i32, i32) {
    %c0_i32 = arith.constant 0 : i32
    %c0_i32_0 = arith.constant 0 : i32
    %c0_i32_1 = arith.constant 0 : i32
    return %c0_i32, %c0_i32_0 : i32, i32
  }
  func.func @transform_2(%arg0: i32) -> (i32, i32) {
    %c0_i32 = arith.constant 0 : i32
    %c0_i32_0 = arith.constant 0 : i32
    %c0_i32_1 = arith.constant 0 : i32
    return %c0_i32, %c0_i32_0 : i32, i32
  }
  func.func @transform_3(%arg0: i32) -> (i32, i32) {
    %c0_i32 = arith.constant 0 : i32
    %c0_i32_0 = arith.constant 0 : i32
    %c0_i32_1 = arith.constant 0 : i32
    return %c0_i32, %c0_i32_0 : i32, i32
  }
  func.func @transform_4(%arg0: i32) -> (i32, i32) {
    %c0_i32 = arith.constant 0 : i32
    %c0_i32_0 = arith.constant 0 : i32
    %c0_i32_1 = arith.constant 0 : i32
    return %c0_i32, %c0_i32_0 : i32, i32
  }
  func.func @transform_5(%arg0: i32) -> (i32, i32) {
    %c0_i32 = arith.constant 0 : i32
    %c0_i32_0 = arith.constant 0 : i32
    return %arg0, %c0_i32 : i32, i32
  }
}

</mosaic_0001>

<llo_original>
// kernel: tpu_custom_call.1
$region0: #{tpu_custom_call.1}
  #allocation0 [shape = 'u32[]', space=smem, size = 0x4, offset = 0x4, fixed_abs, tag = 'smem constant byte address 0x4 - core index']
  #allocation1 [shape = 'u32[144,128]{1,0:T(1,128)}', space=vmem, size = 0x12000, scoped, tag = 'internal scratch']
  %s0 = inlined_call_operand.hbm [shape: f32[8,256], index: 0, kind: input, shape index: {}]
  %s1 = inlined_call_operand.hbm [shape: f32[256,384], index: 1, kind: input, shape index: {}]
  %s2 = inlined_call_operand.vmem [shape: f32[1,384], index: 2, kind: input, shape index: {}]
  %s3 = inlined_call_operand.hbm [shape: f32[64,256], index: 3, kind: input, shape index: {}]
  %s4 = inlined_call_operand.vmem [shape: f32[1,256], index: 4, kind: input, shape index: {}]
  %s5 = inlined_call_operand.hbm [shape: f32[8,128], index: 5, kind: output, shape index: {}]
  %s6 = sld [smem:[#allocation0]]
  $region42: #{tpu_custom_call.1} parent=0
    _
  %s8 = ssub.s32 1, %s6
  %s9 = scalar_select 0, %s8, %s6
  $region1: #{tpu_custom_call.1} parent=0
    #allocation2 [shape = 'u8[8192]{0}', space=vmem, size = 0x2000, scoped, tag = 'input window, operand 0, single buffered']
    #allocation3 [shape = 's32[1]{0}', space=sflag, size = 0x4, scoped, tag = 'scoped memory for tpu_custom_call.1']
    #allocation4 [shape = 's32[1]{0}', space=sflag, size = 0x4, scoped, tag = 'scoped memory for tpu_custom_call.1']
    #allocation5 [shape = 'u8[393216]{0}', space=vmem, size = 0x60000, scoped, tag = 'input window, operand 1, single buffered']
    #allocation6 [shape = 's32[1]{0}', space=sflag, size = 0x4, scoped, tag = 'scoped memory for tpu_custom_call.1']
    #allocation7 [shape = 'u8[65536]{0}', space=vmem, size = 0x10000, scoped, tag = 'input window, operand 3, single buffered']
    #allocation8 [shape = 'u8[4096]{0}', space=vmem, size = 0x1000, scoped, tag = 'output window, operand 0, single buffered']
    %10 = vsyncpa [#allocation3], 0
    %11 = vsyncpa [#allocation6], 0
    %12 = vsyncpa [#allocation4], 0
    // Predicated region
    $region2: #{tpu_custom_call.1} parent=1 // pred_check
      _
    $region3: #{tpu_custom_call.1} parent=1 // pred_check_branch
      %14 = sbr.rel (0) target = $region5
    $region4: #{tpu_custom_call.1} parent=1 // pred_region
      %s16 = ssub.s32 256, 256
      %17 = vsyncadd [#allocation3], %s16
      %s19 = sshll.u32 [#allocation2], 4
      %s20 = int_to_ptr.vmem [resolvable:$true] %s19
      %22 = dma.hbm_to_vmem [thread:$0]  %s0, 256, %s20, [#allocation3]
    $region5: #{tpu_custom_call.1} parent=1 // pred_fallthru
      _
    // Predicated region
    $region6: #{tpu_custom_call.1} parent=1 // pred_check
      _
    $region7: #{tpu_custom_call.1} parent=1 // pred_check_branch
      %24 = sbr.rel (0) target = $region9
    $region8: #{tpu_custom_call.1} parent=1 // pred_region
      %s26 = ssub.s32 12288, 12288
      %27 = vsyncadd [#allocation6], %s26
      %s28 = sshll.u32 [#allocation5], 4
      %s29 = int_to_ptr.vmem [resolvable:$true] %s28
      %34 = dma.hbm_to_vmem [thread:$0]  %s1, 12288, %s29, [#allocation6], 384, 384, 24
    $region9: #{tpu_custom_call.1} parent=1 // pred_fallthru
      _
    // Predicated region
    $region10: #{tpu_custom_call.1} parent=1 // pred_check
      _
    $region11: #{tpu_custom_call.1} parent=1 // pred_check_branch
      %36 = sbr.rel (0) target = $region13
    $region12: #{tpu_custom_call.1} parent=1 // pred_region
      _
    $region13: #{tpu_custom_call.1} parent=1 // pred_fallthru
      _
    // Predicated region
    $region14: #{tpu_custom_call.1} parent=1 // pred_check
      _
    $region15: #{tpu_custom_call.1} parent=1 // pred_check_branch
      %38 = sbr.rel (0) target = $region17
    $region16: #{tpu_custom_call.1} parent=1 // pred_region
      %s40 = ssub.s32 2048, 2048
      %41 = vsyncadd [#allocation6], %s40
      %s42 = sshll.u32 [#allocation7], 4
      %s43 = int_to_ptr.vmem [resolvable:$true] %s42
      %48 = dma.hbm_to_vmem [thread:$0]  %s3, 2048, %s43, [#allocation6], 256, 256, 16
    $region17: #{tpu_custom_call.1} parent=1 // pred_fallthru
      _
    // Predicated region
    $region18: #{tpu_custom_call.1} parent=1 // pred_check
      _
    $region19: #{tpu_custom_call.1} parent=1 // pred_check_branch
      %50 = sbr.rel (0) target = $region21
    $region20: #{tpu_custom_call.1} parent=1 // pred_region
      _
    $region21: #{tpu_custom_call.1} parent=1 // pred_fallthru
      _
    // Predicated region
    $region22: #{tpu_custom_call.1} parent=1 // pred_check
      _
    $region23: #{tpu_custom_call.1} parent=1 // pred_check_branch
      %52 = sbr.rel (0) target = $region25
    $region24: #{tpu_custom_call.1} parent=1 // pred_region
      %53 = dma.done [#allocation3], 256
    $region25: #{tpu_custom_call.1} parent=1 // pred_fallthru
      _
    // Predicated region
    $region26: #{tpu_custom_call.1} parent=1 // pred_check
      _
    $region27: #{tpu_custom_call.1} parent=1 // pred_check_branch
      %55 = sbr.rel (0) target = $region29
    $region28: #{tpu_custom_call.1} parent=1 // pred_region
      %56 = dma.done [#allocation6], 12288
    $region29: #{tpu_custom_call.1} parent=1 // pred_fallthru
      _
    // Predicated region
    $region30: #{tpu_custom_call.1} parent=1 // pred_check
      _
    $region31: #{tpu_custom_call.1} parent=1 // pred_check_branch
      %58 = sbr.rel (0) target = $region33
    $region32: #{tpu_custom_call.1} parent=1 // pred_region
      %59 = dma.done [#allocation6], 2048
    $region33: #{tpu_custom_call.1} parent=1 // pred_fallthru
      _
    %v60 = vld [vmem:[#allocation2] sm:$0xff]
    %v61 = vld [vmem:[#allocation2 + $0x8] sm:$0xff]
    %v62 = vld [vmem:[#allocation5] sm:$0xff]
    %v63 = vld [vmem:[#allocation5 + $0x8] sm:$0xff]
    %v64 = vld [vmem:[#allocation5 + $0x10] sm:$0xff]
    %v65 = vld [vmem:[#allocation5 + $0x18] sm:$0xff]
    %v66 = vld [vmem:[#allocation5 + $0x20] sm:$0xff]
    %v67 = vld [vmem:[#allocation5 + $0x28] sm:$0xff]
    %v68 = vld [vmem:[#allocation5 + $0x30] sm:$0xff]
    %v69 = vld [vmem:[#allocation5 + $0x38] sm:$0xff]
    %v70 = vld [vmem:[#allocation5 + $0x40] sm:$0xff]
    %v71 = vld [vmem:[#allocation5 + $0x48] sm:$0xff]
    %v72 = vld [vmem:[#allocation5 + $0x50] sm:$0xff]
    %v73 = vld [vmem:[#allocation5 + $0x58] sm:$0xff]
    %v74 = vld [vmem:[#allocation5 + $0x60] sm:$0xff]
    %v75 = vld [vmem:[#allocation5 + $0x68] sm:$0xff]
    %v76 = vld [vmem:[#allocation5 + $0x70] sm:$0xff]
    %v77 = vld [vmem:[#allocation5 + $0x78] sm:$0xff]
    %v78 = vld [vmem:[#allocation5 + $0x80] sm:$0xff]
    %v79 = vld [vmem:[#allocation5 + $0x88] sm:$0xff]
    %v80 = vld [vmem:[#allocation5 + $0x90] sm:$0xff]
    %v81 = vld [vmem:[#allocation5 + $0x98] sm:$0xff]
    %v82 = vld [vmem:[#allocation5 + $0xa0] sm:$0xff]
    %v83 = vld [vmem:[#allocation5 + $0xa8] sm:$0xff]
    %v84 = vld [vmem:[#allocation5 + $0xb0] sm:$0xff]
    %v85 = vld [vmem:[#allocation5 + $0xb8] sm:$0xff]
    %v86 = vld [vmem:[#allocation5 + $0xc0] sm:$0xff]
    %v87 = vld [vmem:[#allocation5 + $0xc8] sm:$0xff]
    %v88 = vld [vmem:[#allocation5 + $0xd0] sm:$0xff]
    %v89 = vld [vmem:[#allocation5 + $0xd8] sm:$0xff]
    %v90 = vld [vmem:[#allocation5 + $0xe0] sm:$0xff]
    %v91 = vld [vmem:[#allocation5 + $0xe8] sm:$0xff]
    %v92 = vld [vmem:[#allocation5 + $0xf0] sm:$0xff]
    %v93 = vld [vmem:[#allocation5 + $0xf8] sm:$0xff]
    %v94 = vld [vmem:[#allocation5 + $0x100] sm:$0xff]
    %v95 = vld [vmem:[#allocation5 + $0x108] sm:$0xff]
    %v96 = vld [vmem:[#allocation5 + $0x110] sm:$0xff]
    %v97 = vld [vmem:[#allocation5 + $0x118] sm:$0xff]
    %v98 = vld [vmem:[#allocation5 + $0x120] sm:$0xff]
    %v99 = vld [vmem:[#allocation5 + $0x128] sm:$0xff]
    %v100 = vld [vmem:[#allocation5 + $0x130] sm:$0xff]
    %v101 = vld [vmem:[#allocation5 + $0x138] sm:$0xff]
    %v102 = vld [vmem:[#allocation5 + $0x140] sm:$0xff]
    %v103 = vld [vmem:[#allocation5 + $0x148] sm:$0xff]
    %v104 = vld [vmem:[#allocation5 + $0x150] sm:$0xff]
    %v105 = vld [vmem:[#allocation5 + $0x158] sm:$0xff]
    %v106 = vld [vmem:[#allocation5 + $0x160] sm:$0xff]
    %v107 = vld [vmem:[#allocation5 + $0x168] sm:$0xff]
    %v108 = vld [vmem:[#allocation5 + $0x170] sm:$0xff]
    %v109 = vld [vmem:[#allocation5 + $0x178] sm:$0xff]
    %v110 = vld [vmem:[#allocation5 + $0x180] sm:$0xff]
    %v111 = vld [vmem:[#allocation5 + $0x188] sm:$0xff]
    %v112 = vld [vmem:[#allocation5 + $0x190] sm:$0xff]
    %v113 = vld [vmem:[#allocation5 + $0x198] sm:$0xff]
    %v114 = vld [vmem:[#allocation5 + $0x1a0] sm:$0xff]
    %v115 = vld [vmem:[#allocation5 + $0x1a8] sm:$0xff]
    %v116 = vld [vmem:[#allocation5 + $0x1b0] sm:$0xff]
    %v117 = vld [vmem:[#allocation5 + $0x1b8] sm:$0xff]
    %v118 = vld [vmem:[#allocation5 + $0x1c0] sm:$0xff]
    %v119 = vld [vmem:[#allocation5 + $0x1c8] sm:$0xff]
    %v120 = vld [vmem:[#allocation5 + $0x1d0] sm:$0xff]
    %v121 = vld [vmem:[#allocation5 + $0x1d8] sm:$0xff]
    %v122 = vld [vmem:[#allocation5 + $0x1e0] sm:$0xff]
    %v123 = vld [vmem:[#allocation5 + $0x1e8] sm:$0xff]
    %v124 = vld [vmem:[#allocation5 + $0x1f0] sm:$0xff]
    %v125 = vld [vmem:[#allocation5 + $0x1f8] sm:$0xff]
    %v126 = vld [vmem:[#allocation5 + $0x200] sm:$0xff]
    %v127 = vld [vmem:[#allocation5 + $0x208] sm:$0xff]
    %v128 = vld [vmem:[#allocation5 + $0x210] sm:$0xff]
    %v129 = vld [vmem:[#allocation5 + $0x218] sm:$0xff]
    %v130 = vld [vmem:[#allocation5 + $0x220] sm:$0xff]
    %v131 = vld [vmem:[#allocation5 + $0x228] sm:$0xff]
    %v132 = vld [vmem:[#allocation5 + $0x230] sm:$0xff]
    %v133 = vld [vmem:[#allocation5 + $0x238] sm:$0xff]
    %v134 = vld [vmem:[#allocation5 + $0x240] sm:$0xff]
    %v135 = vld [vmem:[#allocation5 + $0x248] sm:$0xff]
    %v136 = vld [vmem:[#allocation5 + $0x250] sm:$0xff]
    %v137 = vld [vmem:[#allocation5 + $0x258] sm:$0xff]
    %v138 = vld [vmem:[#allocation5 + $0x260] sm:$0xff]
    %v139 = vld [vmem:[#allocation5 + $0x268] sm:$0xff]
    %v140 = vld [vmem:[#allocation5 + $0x270] sm:$0xff]
    %v141 = vld [vmem:[#allocation5 + $0x278] sm:$0xff]
    %v142 = vld [vmem:[#allocation5 + $0x280] sm:$0xff]
    %v143 = vld [vmem:[#allocation5 + $0x288] sm:$0xff]
    %v144 = vld [vmem:[#allocation5 + $0x290] sm:$0xff]
    %v145 = vld [vmem:[#allocation5 + $0x298] sm:$0xff]
    %v146 = vld [vmem:[#allocation5 + $0x2a0] sm:$0xff]
    %v147 = vld [vmem:[#allocation5 + $0x2a8] sm:$0xff]
    %v148 = vld [vmem:[#allocation5 + $0x2b0] sm:$0xff]
    %v149 = vld [vmem:[#allocation5 + $0x2b8] sm:$0xff]
    %v150 = vld [vmem:[#allocation5 + $0x2c0] sm:$0xff]
    %v151 = vld [vmem:[#allocation5 + $0x2c8] sm:$0xff]
    %v152 = vld [vmem:[#allocation5 + $0x2d0] sm:$0xff]
    %v153 = vld [vmem:[#allocation5 + $0x2d8] sm:$0xff]
    %v154 = vld [vmem:[#allocation5 + $0x2e0] sm:$0xff]
    %v155 = vld [vmem:[#allocation5 + $0x2e8] sm:$0xff]
    %v156 = vld [vmem:[#allocation5 + $0x2f0] sm:$0xff]
    %v157 = vld [vmem:[#allocation5 + $0x2f8] sm:$0xff]
    %v158 = vld [vmem:[%s2] sm:$0x7]
    %v160 = vlaneseq
    %v161 = vshrl.u32 %v160, 7
    %v162 = vsub.s32 0, %v161
    %v163 = vrot.slane %v158, %v162
    %v164 = vlaneseq
    %v165 = vshrl.u32 %v164, 7
    %v166 = vsub.s32 1, %v165
    %v167 = vrot.slane %v158, %v166
    %v168 = vlaneseq
    %v169 = vshrl.u32 %v168, 7
    %v170 = vsub.s32 2, %v169
    %v171 = vrot.slane %v158, %v170
    %175 = vmatprep.subr.mxu0 %v63
    %176 = vmatpush1.msra.mxu0 %v62
    %177 = vmatprep.subr.mxu0 %v66
    %178 = vmatpush1.msra.mxu0 %v65
    %179 = vmatprep.subr.mxu0 %v69
    %180 = vmatpush1.msra.mxu0 %v68
    %181 = vmatprep.subr.mxu0 %v72
    %182 = vmatpush1.msra.mxu0 %v71
    %183 = vmatprep.subr.mxu0 %v75
    %184 = vmatpush1.msra.mxu0 %v74
    %185 = vmatprep.subr.mxu0 %v78
    %186 = vmatpush1.msra.mxu0 %v77
    %187 = vmatprep.subr.mxu0 %v81
    %188 = vmatpush1.msra.mxu0 %v80
    %189 = vmatprep.subr.mxu0 %v84
    %190 = vmatpush1.msra.mxu0 %v83
    %191 = vmatprep.subr.mxu0 %v87
    %192 = vmatpush1.msra.mxu0 %v86
    %193 = vmatprep.subr.mxu0 %v90
    %194 = vmatpush1.msra.mxu0 %v89
    %195 = vmatprep.subr.mxu0 %v93
    %196 = vmatpush1.msra.mxu0 %v92
    %197 = vmatprep.subr.mxu0 %v96
    %198 = vmatpush1.msra.mxu0 %v95
    %199 = vmatprep.subr.mxu0 %v99
    %200 = vmatpush1.msra.mxu0 %v98
    %201 = vmatprep.subr.mxu0 %v102
    %202 = vmatpush1.msra.mxu0 %v101
    %203 = vmatprep.subr.mxu0 %v105
    %204 = vmatpush1.msra.mxu0 %v104
    %205 = vmatprep.subr.mxu0 %v108
    %206 = vmatpush1.msra.mxu0 %v107
    %207 = vmatprep.subr.mxu0 %v111
    %208 = vmatpush1.msra.mxu0 %v110
    %209 = vmatprep.subr.mxu0 %v114
    %210 = vmatpush1.msra.mxu0 %v113
    %211 = vmatprep.subr.mxu0 %v117
    %212 = vmatpush1.msra.mxu0 %v116
    %213 = vmatprep.subr.mxu0 %v120
    %214 = vmatpush1.msra.mxu0 %v119
    %215 = vmatprep.subr.mxu0 %v123
    %216 = vmatpush1.msra.mxu0 %v122
    %217 = vmatprep.subr.mxu0 %v126
    %218 = vmatpush1.msra.mxu0 %v125
    %219 = vmatprep.subr.mxu0 %v129
    %220 = vmatpush1.msra.mxu0 %v128
    %221 = vmatprep.subr.mxu0 %v132
    %222 = vmatpush1.msra.mxu0 %v131
    %223 = vmatprep.subr.mxu0 %v135
    %224 = vmatpush1.msra.mxu0 %v134
    %225 = vmatprep.subr.mxu0 %v138
    %226 = vmatpush1.msra.mxu0 %v137
    %227 = vmatprep.subr.mxu0 %v141
    %228 = vmatpush1.msra.mxu0 %v140
    %229 = vmatprep.subr.mxu0 %v144
    %230 = vmatpush1.msra.mxu0 %v143
    %231 = vmatprep.subr.mxu0 %v147
    %232 = vmatpush1.msra.mxu0 %v146
    %233 = vmatprep.subr.mxu0 %v150
    %234 = vmatpush1.msra.mxu0 %v149
    %235 = vmatprep.subr.mxu0 %v153
    %236 = vmatpush1.msra.mxu0 %v152
    %237 = vmatprep.subr.mxu0 %v156
    %238 = vmatpush1.msra.mxu0 %v155
    %239 = vmatprep.mubr.f32.mxu0 %v61
    %240 = vmatmul.mubr.f32.gmra.mrb[0].mxu0 %v60
    %v241 = vpop.f32.mrb[0].mxu0
    %v242 = vadd.f32 %v163, %v241
    %v243 = vpop.f32.mrb[0].mxu0
    %v244 = vadd.f32 %v167, %v243
    %245 = vdwg.mxu0
    %246 = vmatprep.subr.mxu0 0.0
    %247 = vmatpush1.msra.mxu0 %v64
    %248 = vmatprep.subr.mxu0 0.0
    %249 = vmatpush1.msra.mxu0 %v67
    %250 = vmatprep.subr.mxu0 0.0
    %251 = vmatpush1.msra.mxu0 %v70
    %252 = vmatprep.subr.mxu0 0.0
    %253 = vmatpush1.msra.mxu0 %v73
    %254 = vmatprep.subr.mxu0 0.0
    %255 = vmatpush1.msra.mxu0 %v76
    %256 = vmatprep.subr.mxu0 0.0
    %257 = vmatpush1.msra.mxu0 %v79
    %258 = vmatprep.subr.mxu0 0.0
    %259 = vmatpush1.msra.mxu0 %v82
    %260 = vmatprep.subr.mxu0 0.0
    %261 = vmatpush1.msra.mxu0 %v85
    %262 = vmatprep.subr.mxu0 0.0
    %263 = vmatpush1.msra.mxu0 %v88
    %264 = vmatprep.subr.mxu0 0.0
    %265 = vmatpush1.msra.mxu0 %v91
    %266 = vmatprep.subr.mxu0 0.0
    %267 = vmatpush1.msra.mxu0 %v94
    %268 = vmatprep.subr.mxu0 0.0
    %269 = vmatpush1.msra.mxu0 %v97
    %270 = vmatprep.subr.mxu0 0.0
    %271 = vmatpush1.msra.mxu0 %v100
    %272 = vmatprep.subr.mxu0 0.0
    %273 = vmatpush1.msra.mxu0 %v103
    %274 = vmatprep.subr.mxu0 0.0
    %275 = vmatpush1.msra.mxu0 %v106
    %276 = vmatprep.subr.mxu0 0.0
    %277 = vmatpush1.msra.mxu0 %v109
    %278 = vmatprep.subr.mxu0 0.0
    %279 = vmatpush1.msra.mxu0 %v112
    %280 = vmatprep.subr.mxu0 0.0
    %281 = vmatpush1.msra.mxu0 %v115
    %282 = vmatprep.subr.mxu0 0.0
    %283 = vmatpush1.msra.mxu0 %v118
    %284 = vmatprep.subr.mxu0 0.0
    %285 = vmatpush1.msra.mxu0 %v121
    %286 = vmatprep.subr.mxu0 0.0
    %287 = vmatpush1.msra.mxu0 %v124
    %288 = vmatprep.subr.mxu0 0.0
    %289 = vmatpush1.msra.mxu0 %v127
    %290 = vmatprep.subr.mxu0 0.0
    %291 = vmatpush1.msra.mxu0 %v130
    %292 = vmatprep.subr.mxu0 0.0
    %293 = vmatpush1.msra.mxu0 %v133
    %294 = vmatprep.subr.mxu0 0.0
    %295 = vmatpush1.msra.mxu0 %v136
    %296 = vmatprep.subr.mxu0 0.0
    %297 = vmatpush1.msra.mxu0 %v139
    %298 = vmatprep.subr.mxu0 0.0
    %299 = vmatpush1.msra.mxu0 %v142
    %300 = vmatprep.subr.mxu0 0.0
    %301 = vmatpush1.msra.mxu0 %v145
    %302 = vmatprep.subr.mxu0 0.0
    %303 = vmatpush1.msra.mxu0 %v148
    %304 = vmatprep.subr.mxu0 0.0
    %305 = vmatpush1.msra.mxu0 %v151
    %306 = vmatprep.subr.mxu0 0.0
    %307 = vmatpush1.msra.mxu0 %v154
    %308 = vmatprep.subr.mxu0 0.0
    %309 = vmatpush1.msra.mxu0 %v157
    %310 = vmatprep.mubr.f32.mxu0 %v61
    %311 = vmatmul.mubr.f32.gmra.mrb[0].mxu0 %v60
    %v312 = vpop.f32.mrb[0].mxu0
    %v313 = vadd.f32 %v171, %v312
    %v314 = vpop.f32.mrb[0].mxu0
    %315 = vdwg.mxu0
    %v316 = vxor.u32 %v242, 2147483648
    %v317 = vxor.u32 %v244, 2147483648
    %v318 = vxor.u32 %v313, 2147483648
    %v319 = vmul.f32 %v316, 1.442695
    %v320 = vpow.pop %v319
    %v321 = vmul.f32 %v317, 1.442695
    %v322 = vpow.pop %v321
    %v323 = vmul.f32 %v318, 1.442695
    %v324 = vpow.pop %v323
    %v325 = vadd.f32 %v320, 1.0
    %v326 = vadd.f32 %v322, 1.0
    %v327 = vadd.f32 %v324, 1.0
    %v328 = vrcp.pop %v325
    %v329 = vmul.f32 1.0, %v328
    %v330 = vrcp.pop %v326
    %v331 = vmul.f32 1.0, %v330
    %v332 = vrcp.pop %v327
    %v333 = vmul.f32 1.0, %v332
    %335 = vrot.lane.b32.xlu0 %v329, 64
    %v336 = vpop.permute.xlu0 %335
    %v338 = vmul.f32 %v329, %v336
    %v339 = vmul.f32 %v338, %v331
    %341 = vrot.lane.b32.xlu0 %v331, 64
    %v342 = vpop.permute.xlu0 %341
    %v344 = vmul.f32 %v339, %v342
    %v345 = vmul.f32 %v313, %v333
    %v346 = vld [vmem:[#allocation7] sm:$0xff]
    %v347 = vld [vmem:[#allocation7 + $0x10] sm:$0xff]
    %v348 = vld [vmem:[#allocation7 + $0x20] sm:$0xff]
    %v349 = vld [vmem:[#allocation7 + $0x30] sm:$0xff]
    %v350 = vld [vmem:[#allocation7 + $0x40] sm:$0xff]
    %v351 = vld [vmem:[#allocation7 + $0x50] sm:$0xff]
    %v352 = vld [vmem:[#allocation7 + $0x60] sm:$0xff]
    %v353 = vld [vmem:[#allocation7 + $0x70] sm:$0xff]
    %v354 = vld [vmem:[%s4] sm:$0x1]
    %v356 = vlaneseq
    %v357 = vshrl.u32 %v356, 7
    %v358 = vsub.s32 0, %v357
    %v359 = vrot.slane %v354, %v358
    %vm361 = vcmask 523264
    %v363 = vsel %vm361, %v344, 0
    %365 = vmatprep.subr.mxu0 0.0
    %366 = vmatpush1.msra.mxu0 %v346
    %367 = vmatprep.subr.mxu0 0.0
    %368 = vmatpush1.msra.mxu0 %v347
    %369 = vmatprep.subr.mxu0 0.0
    %370 = vmatpush1.msra.mxu0 %v348
    %371 = vmatprep.subr.mxu0 0.0
    %372 = vmatpush1.msra.mxu0 %v349
    %373 = vmatprep.subr.mxu0 0.0
    %374 = vmatpush1.msra.mxu0 %v350
    %375 = vmatprep.subr.mxu0 0.0
    %376 = vmatpush1.msra.mxu0 %v351
    %377 = vmatprep.subr.mxu0 0.0
    %378 = vmatpush1.msra.mxu0 %v352
    %379 = vmatprep.subr.mxu0 0.0
    %380 = vmatpush1.msra.mxu0 %v353
    %381 = vmatprep.subr.mxu0 0.0
    %382 = vmatpush1.msra.mxu0 0.0
    %383 = vmatprep.subr.mxu0 0.0
    %384 = vmatpush1.msra.mxu0 0.0
    %385 = vmatprep.subr.mxu0 0.0
    %386 = vmatpush1.msra.mxu0 0.0
    %387 = vmatprep.subr.mxu0 0.0
    %388 = vmatpush1.msra.mxu0 0.0
    %389 = vmatprep.subr.mxu0 0.0
    %390 = vmatpush1.msra.mxu0 0.0
    %391 = vmatprep.subr.mxu0 0.0
    %392 = vmatpush1.msra.mxu0 0.0
    %393 = vmatprep.subr.mxu0 0.0
    %394 = vmatpush1.msra.mxu0 0.0
    %395 = vmatprep.subr.mxu0 0.0
    %396 = vmatpush1.msra.mxu0 0.0
    %397 = vmatprep.subr.mxu0 0.0
    %398 = vmatpush1.msra.mxu0 0.0
    %399 = vmatprep.subr.mxu0 0.0
    %400 = vmatpush1.msra.mxu0 0.0
    %401 = vmatprep.subr.mxu0 0.0
    %402 = vmatpush1.msra.mxu0 0.0
    %403 = vmatprep.subr.mxu0 0.0
    %404 = vmatpush1.msra.mxu0 0.0
    %405 = vmatprep.subr.mxu0 0.0
    %406 = vmatpush1.msra.mxu0 0.0
    %407 = vmatprep.subr.mxu0 0.0
    %408 = vmatpush1.msra.mxu0 0.0
    %409 = vmatprep.subr.mxu0 0.0
    %410 = vmatpush1.msra.mxu0 0.0
    %411 = vmatprep.subr.mxu0 0.0
    %412 = vmatpush1.msra.mxu0 0.0
    %413 = vmatprep.subr.mxu0 0.0
    %414 = vmatpush1.msra.mxu0 0.0
    %415 = vmatprep.subr.mxu0 0.0
    %416 = vmatpush1.msra.mxu0 0.0
    %417 = vmatprep.subr.mxu0 0.0
    %418 = vmatpush1.msra.mxu0 0.0
    %419 = vmatprep.subr.mxu0 0.0
    %420 = vmatpush1.msra.mxu0 0.0
    %421 = vmatprep.subr.mxu0 0.0
    %422 = vmatpush1.msra.mxu0 0.0
    %423 = vmatprep.subr.mxu0 0.0
    %424 = vmatpush1.msra.mxu0 0.0
    %425 = vmatprep.subr.mxu0 0.0
    %426 = vmatpush1.msra.mxu0 0.0
    %427 = vmatprep.subr.mxu0 0.0
    %428 = vmatpush1.msra.mxu0 0.0
    %429 = vmatprep.mubr.f32.mxu0 0.0
    %430 = vmatmul.mubr.f32.gmra.mrb[0].mxu0 %v363
    %v431 = vpop.f32.mrb[0].mxu0
    %v432 = vadd.f32 %v359, %v431
    %v433 = vpop.f32.mrb[0].mxu0
    %434 = vdwg.mxu0
    %v435 = vxor.u32 %v432, 2147483648
    %v436 = vmul.f32 %v435, 1.442695
    %v437 = vpow.pop %v436
    %v438 = vadd.f32 %v437, 1.0
    %v439 = vrcp.pop %v438
    %v440 = vmul.f32 1.0, %v439
    %v441 = vmul.f32 %v432, %v440
    %v442 = vmul.f32 %v441, %v345
    %451 = vrot.lane.b32.xlu0 %v346, 64
    %v452 = vpop.permute.xlu0 %451
    %453 = vrot.lane.b32.xlu0 %v347, 64
    %v454 = vpop.permute.xlu0 %453
    %455 = vrot.lane.b32.xlu0 %v348, 64
    %v456 = vpop.permute.xlu0 %455
    %457 = vrot.lane.b32.xlu0 %v349, 64
    %v458 = vpop.permute.xlu0 %457
    %459 = vrot.lane.b32.xlu0 %v350, 64
    %v460 = vpop.permute.xlu0 %459
    %461 = vrot.lane.b32.xlu0 %v351, 64
    %v462 = vpop.permute.xlu0 %461
    %463 = vrot.lane.b32.xlu0 %v352, 64
    %v464 = vpop.permute.xlu0 %463
    %465 = vrot.lane.b32.xlu0 %v353, 64
    %v466 = vpop.permute.xlu0 %465
    %475 = vrot.lane.b32.xlu0 %v359, 64
    %v476 = vpop.permute.xlu0 %475
    %v479 = vsel %vm361, %v442, 0
    %481 = vmatprep.subr.mxu0 0.0
    %482 = vmatpush1.msra.mxu0 %v452
    %483 = vmatprep.subr.mxu0 0.0
    %484 = vmatpush1.msra.mxu0 %v454
    %485 = vmatprep.subr.mxu0 0.0
    %486 = vmatpush1.msra.mxu0 %v456
    %487 = vmatprep.subr.mxu0 0.0
    %488 = vmatpush1.msra.mxu0 %v458
    %489 = vmatprep.subr.mxu0 0.0
    %490 = vmatpush1.msra.mxu0 %v460
    %491 = vmatprep.subr.mxu0 0.0
    %492 = vmatpush1.msra.mxu0 %v462
    %493 = vmatprep.subr.mxu0 0.0
    %494 = vmatpush1.msra.mxu0 %v464
    %495 = vmatprep.subr.mxu0 0.0
    %496 = vmatpush1.msra.mxu0 %v466
    %497 = vmatprep.subr.mxu0 0.0
    %498 = vmatpush1.msra.mxu0 0.0
    %499 = vmatprep.subr.mxu0 0.0
    %500 = vmatpush1.msra.mxu0 0.0
    %501 = vmatprep.subr.mxu0 0.0
    %502 = vmatpush1.msra.mxu0 0.0
    %503 = vmatprep.subr.mxu0 0.0
    %504 = vmatpush1.msra.mxu0 0.0
    %505 = vmatprep.subr.mxu0 0.0
    %506 = vmatpush1.msra.mxu0 0.0
    %507 = vmatprep.subr.mxu0 0.0
    %508 = vmatpush1.msra.mxu0 0.0
    %509 = vmatprep.subr.mxu0 0.0
    %510 = vmatpush1.msra.mxu0 0.0
    %511 = vmatprep.subr.mxu0 0.0
    %512 = vmatpush1.msra.mxu0 0.0
    %513 = vmatprep.subr.mxu0 0.0
    %514 = vmatpush1.msra.mxu0 0.0
    %515 = vmatprep.subr.mxu0 0.0
    %516 = vmatpush1.msra.mxu0 0.0
    %517 = vmatprep.subr.mxu0 0.0
    %518 = vmatpush1.msra.mxu0 0.0
    %519 = vmatprep.subr.mxu0 0.0
    %520 = vmatpush1.msra.mxu0 0.0
    %521 = vmatprep.subr.mxu0 0.0
    %522 = vmatpush1.msra.mxu0 0.0
    %523 = vmatprep.subr.mxu0 0.0
    %524 = vmatpush1.msra.mxu0 0.0
    %525 = vmatprep.subr.mxu0 0.0
    %526 = vmatpush1.msra.mxu0 0.0
    %527 = vmatprep.subr.mxu0 0.0
    %528 = vmatpush1.msra.mxu0 0.0
    %529 = vmatprep.subr.mxu0 0.0
    %530 = vmatpush1.msra.mxu0 0.0
    %531 = vmatprep.subr.mxu0 0.0
    %532 = vmatpush1.msra.mxu0 0.0
    %533 = vmatprep.subr.mxu0 0.0
    %534 = vmatpush1.msra.mxu0 0.0
    %535 = vmatprep.subr.mxu0 0.0
    %536 = vmatpush1.msra.mxu0 0.0
    %537 = vmatprep.subr.mxu0 0.0
    %538 = vmatpush1.msra.mxu0 0.0
    %539 = vmatprep.subr.mxu0 0.0
    %540 = vmatpush1.msra.mxu0 0.0
    %541 = vmatprep.subr.mxu0 0.0
    %542 = vmatpush1.msra.mxu0 0.0
    %543 = vmatprep.subr.mxu0 0.0
    %544 = vmatpush1.msra.mxu0 0.0
    %545 = vmatprep.mubr.f32.mxu0 0.0
    %546 = vmatmul.mubr.f32.gmra.mrb[0].mxu0 %v479
    %v547 = vpop.f32.mrb[0].mxu0
    %v548 = vadd.f32 %v476, %v547
    %v549 = vpop.f32.mrb[0].mxu0
    %550 = vdwg.mxu0
    %v551 = vxor.u32 %v548, 2147483648
    %v552 = vmul.f32 %v551, 1.442695
    %v553 = vpow.pop %v552
    %v554 = vadd.f32 %v553, 1.0
    %v555 = vrcp.pop %v554
    %v556 = vmul.f32 1.0, %v555
    %v557 = vmul.f32 %v548, %v556
    %v558 = vld [vmem:[#allocation7 + $0x8] sm:$0xff]
    %v559 = vld [vmem:[#allocation7 + $0x18] sm:$0xff]
    %v560 = vld [vmem:[#allocation7 + $0x28] sm:$0xff]
    %v561 = vld [vmem:[#allocation7 + $0x38] sm:$0xff]
    %v562 = vld [vmem:[#allocation7 + $0x48] sm:$0xff]
    %v563 = vld [vmem:[#allocation7 + $0x58] sm:$0xff]
    %v564 = vld [vmem:[#allocation7 + $0x68] sm:$0xff]
    %v565 = vld [vmem:[#allocation7 + $0x78] sm:$0xff]
    %v566 = vld [vmem:[%s4 + $0x1] sm:$0x1]
    %v568 = vlaneseq
    %v569 = vshrl.u32 %v568, 7
    %v570 = vsub.s32 0, %v569
    %v571 = vrot.slane %v566, %v570
    %v574 = vsel %vm361, %v557, 0
    %576 = vmatprep.subr.mxu0 0.0
    %577 = vmatpush1.msra.mxu0 %v558
    %578 = vmatprep.subr.mxu0 0.0
    %579 = vmatpush1.msra.mxu0 %v559
    %580 = vmatprep.subr.mxu0 0.0
    %581 = vmatpush1.msra.mxu0 %v560
    %582 = vmatprep.subr.mxu0 0.0
    %583 = vmatpush1.msra.mxu0 %v561
    %584 = vmatprep.subr.mxu0 0.0
    %585 = vmatpush1.msra.mxu0 %v562
    %586 = vmatprep.subr.mxu0 0.0
    %587 = vmatpush1.msra.mxu0 %v563
    %588 = vmatprep.subr.mxu0 0.0
    %589 = vmatpush1.msra.mxu0 %v564
    %590 = vmatprep.subr.mxu0 0.0
    %591 = vmatpush1.msra.mxu0 %v565
    %592 = vmatprep.subr.mxu0 0.0
    %593 = vmatpush1.msra.mxu0 0.0
    %594 = vmatprep.subr.mxu0 0.0
    %595 = vmatpush1.msra.mxu0 0.0
    %596 = vmatprep.subr.mxu0 0.0
    %597 = vmatpush1.msra.mxu0 0.0
    %598 = vmatprep.subr.mxu0 0.0
    %599 = vmatpush1.msra.mxu0 0.0
    %600 = vmatprep.subr.mxu0 0.0
    %601 = vmatpush1.msra.mxu0 0.0
    %602 = vmatprep.subr.mxu0 0.0
    %603 = vmatpush1.msra.mxu0 0.0
    %604 = vmatprep.subr.mxu0 0.0
    %605 = vmatpush1.msra.mxu0 0.0
    %606 = vmatprep.subr.mxu0 0.0
    %607 = vmatpush1.msra.mxu0 0.0
    %608 = vmatprep.subr.mxu0 0.0
    %609 = vmatpush1.msra.mxu0 0.0
    %610 = vmatprep.subr.mxu0 0.0
    %611 = vmatpush1.msra.mxu0 0.0
    %612 = vmatprep.subr.mxu0 0.0
    %613 = vmatpush1.msra.mxu0 0.0
    %614 = vmatprep.subr.mxu0 0.0
    %615 = vmatpush1.msra.mxu0 0.0
    %616 = vmatprep.subr.mxu0 0.0
    %617 = vmatpush1.msra.mxu0 0.0
    %618 = vmatprep.subr.mxu0 0.0
    %619 = vmatpush1.msra.mxu0 0.0
    %620 = vmatprep.subr.mxu0 0.0
    %621 = vmatpush1.msra.mxu0 0.0
    %622 = vmatprep.subr.mxu0 0.0
    %623 = vmatpush1.msra.mxu0 0.0
    %624 = vmatprep.subr.mxu0 0.0
    %625 = vmatpush1.msra.mxu0 0.0
    %626 = vmatprep.subr.mxu0 0.0
    %627 = vmatpush1.msra.mxu0 0.0
    %628 = vmatprep.subr.mxu0 0.0
    %629 = vmatpush1.msra.mxu0 0.0
    %630 = vmatprep.subr.mxu0 0.0
    %631 = vmatpush1.msra.mxu0 0.0
    %632 = vmatprep.subr.mxu0 0.0
    %633 = vmatpush1.msra.mxu0 0.0
    %634 = vmatprep.subr.mxu0 0.0
    %635 = vmatpush1.msra.mxu0 0.0
    %636 = vmatprep.subr.mxu0 0.0
    %637 = vmatpush1.msra.mxu0 0.0
    %638 = vmatprep.subr.mxu0 0.0
    %639 = vmatpush1.msra.mxu0 0.0
    %640 = vmatprep.mubr.f32.mxu0 0.0
    %641 = vmatmul.mubr.f32.gmra.mrb[0].mxu0 %v574
    %v642 = vpop.f32.mrb[0].mxu0
    %v643 = vadd.f32 %v571, %v642
    %v644 = vpop.f32.mrb[0].mxu0
    %645 = vdwg.mxu0
    %646 = vst [vmem:[#allocation8] sm:$0xff] %v643
    // Predicated region
    $region34: #{tpu_custom_call.1} parent=1 // pred_check
      _
    $region35: #{tpu_custom_call.1} parent=1 // pred_check_branch
      %648 = sbr.rel (0) target = $region37
    $region36: #{tpu_custom_call.1} parent=1 // pred_region
      %s650 = ssub.s32 128, 128
      %651 = vsyncadd [#allocation4], %s650
      %s653 = sshll.u32 [#allocation8], 4
      %s654 = int_to_ptr.vmem [resolvable:$true] %s653
      %656 = dma.vmem_to_hbm [thread:$0]  %s654, 128, %s5, [#allocation4]
    $region37: #{tpu_custom_call.1} parent=1 // pred_fallthru
      _
    // Predicated region
    $region38: #{tpu_custom_call.1} parent=1 // pred_check
      _
    $region39: #{tpu_custom_call.1} parent=1 // pred_check_branch
      %658 = sbr.rel (0) target = $region41
    $region40: #{tpu_custom_call.1} parent=1 // pred_region
      %659 = dma.done [#allocation4], 128
    $region41: #{tpu_custom_call.1} parent=1 // pred_fallthru
      _
    %660 = vsyncpa [#allocation3], 1
    %661 = vsyncpa [#allocation6], 1
    %662 = vsyncpa [#allocation4], 1

</llo_original>
